<compile_context>
chip_gen: v7x
topology: tpu7x:2x2x1
jax: 0.10.0
libtpu: 0.0.40
codegen_flags: <defaults>
</compile_context>

<pallas_src>
import jax
import jax.numpy as jnp
from jax.experimental import pallas as pl
from jax.experimental.pallas import tpu as pltpu


def _round_up(x: int, m: int) -> int:
    return ((x + m - 1) // m) * m


def _make_focal_loss_kernel(alpha: float, gamma: float, n_rows: int,
                            tile_n: int, scale: float):
    def kernel(logits_ref, tgt_ref, out_ref):
        i = pl.program_id(0)

        @pl.when(i == 0)
        def _init():
            out_ref[...] = jnp.zeros_like(out_ref)

        logits = logits_ref[...].astype(jnp.float32)      # (tile_n, C)
        tgt = tgt_ref[...]                                # (tile_n, 1) int32

        # Row-wise logsumexp (reductions respect the logical C, not the
        # lane-padded vreg width).
        m = jnp.max(logits, axis=-1, keepdims=True)                       # (tile_n, 1)
        lse = jnp.log(jnp.sum(jnp.exp(logits - m), axis=-1,
                              keepdims=True)) + m                         # (tile_n, 1)

        # Target logit via iota == target (no gather, no one-hot input).
        col_ids = jax.lax.broadcasted_iota(jnp.int32, logits.shape, 1)
        tgt_logit = jnp.sum(jnp.where(col_ids == tgt, logits, 0.0),
                            axis=-1, keepdims=True)                       # (tile_n, 1)

        # Per-row cross entropy.  Rows past the true batch size (tail block
        # padding, contents unspecified) are zeroed here; everything
        # downstream is elementwise so they contribute exactly 0.
        row_ids = i * tile_n + jax.lax.broadcasted_iota(jnp.int32, (tile_n, 1), 0)
        valid = row_ids < n_rows
        ce = jnp.where(valid, jnp.maximum(lse - tgt_logit, 0.0), 0.0)     # (tile_n, 1)

        pt = jnp.exp(-ce)
        w = 1.0 - pt
        if float(gamma) == 2.0:
            mod = w * w                                   # VPU mul, no pow/EUP
        elif float(gamma).is_integer() and gamma >= 0:
            mod = jnp.ones_like(w)
            for _ in range(int(gamma)):
                mod = mod * w
        else:
            mod = w ** jnp.float32(gamma)
        focal = jnp.float32(alpha) * mod * ce                             # (tile_n, 1)

        # Accumulate into the resident (1, 1) output block.
        out_ref[...] += jnp.sum(focal, keepdims=True)

        @pl.when(i == pl.num_programs(0) - 1)
        def _finalize():
            out_ref[...] *= jnp.float32(scale)

    return kernel


def focal_loss(inputs: jax.Array, targets: jax.Array,
               alpha: float = 1.0, gamma: float = 2.0,
               reduction: str = "mean", tile_n: int = 1024) -> jax.Array:
    """FocalLoss.forward (PyTorch semantics) for reduction in {'mean', 'sum'}.

    inputs:  (N, C) logits (float32 or bfloat16)
    targets: (N,)   int class indices in [0, C)
    returns: scalar float32
    """
    # TODO(synk): reduction='none' (per-sample vector output) is not implemented.
    if reduction not in ("mean", "sum"):
        raise NotImplementedError("only reduction='mean' or 'sum' supported")

    n, c = inputs.shape

    # Rows per grid step: multiple of 8 (sublane), capped by the batch size and
    # by a ~16 MiB VMEM budget per (double-buffered) logits block.
    budget_rows = max(8, (16 * 1024 * 1024) // (max(c, 128) * 4))
    tile_n = _round_up(max(8, min(int(tile_n), budget_rows)), 8)
    tile_n = min(tile_n, _round_up(n, 8))

    tgt = targets.astype(jnp.int32).reshape(n, 1)
    scale = (1.0 / n) if reduction == "mean" else 1.0
    grid = (pl.cdiv(n, tile_n),)

    out = pl.pallas_call(
        _make_focal_loss_kernel(float(alpha), float(gamma), n, tile_n, scale),
        out_shape=jax.ShapeDtypeStruct((1, 1), jnp.float32),
        grid_spec=pltpu.PrefetchScalarGridSpec(
            num_scalar_prefetch=0,
            grid=grid,
            in_specs=[
                pl.BlockSpec((tile_n, c), lambda i: (i, 0)),  # logits tile (full C)
                pl.BlockSpec((tile_n, 1), lambda i: (i, 0)),  # targets column
            ],
            out_specs=pl.BlockSpec((1, 1), lambda i: (0, 0)),  # resident accumulator
        ),
        compiler_params=pltpu.CompilerParams(
            dimension_semantics=("arbitrary",),   # scalar accumulation across tiles
            vmem_limit_bytes=64 * 1024 * 1024,
        ),
    )(inputs, tgt)
    return out[0, 0]


def _reference(logits, targets, alpha=1.0, gamma=2.0, reduction="mean"):
    log_probs = jax.nn.log_softmax(logits.astype(jnp.float32), axis=-1)
    ce = -jnp.take_along_axis(log_probs, targets[:, None], axis=-1)[:, 0]
    pt = jnp.exp(-ce)
    fl = alpha * (1.0 - pt) ** gamma * ce
    return jnp.mean(fl) if reduction == "mean" else jnp.sum(fl)


if __name__ == "__main__":
    key = jax.random.PRNGKey(0)
    k1, k2, k3, k4 = jax.random.split(key, 4)

    # Case 1: small batch, single tile, class axis (16) far below 128 lanes.
    N, C = 8, 16
    logits = jax.random.normal(k1, (N, C), dtype=jnp.float32)
    targets = jax.random.randint(k2, (N,), 0, C, dtype=jnp.int32)
    loss = jax.block_until_ready(focal_loss(logits, targets))
    ref = _reference(logits, targets)
    assert jnp.allclose(loss, ref, rtol=1e-5, atol=1e-5), (loss, ref)

    # Case 2: batch not a multiple of the tile (tile_n=8 -> 3 grid steps) ->
    # exercises the accumulator and tail-row masking of the partial last block.
    N2, C2 = 20, 16
    logits2 = jax.random.normal(k3, (N2, C2), dtype=jnp.float32)
    targets2 = jax.random.randint(k4, (N2,), 0, C2, dtype=jnp.int32)
    loss2 = jax.block_until_ready(focal_loss(logits2, targets2, tile_n=8))
    ref2 = _reference(logits2, targets2)
    assert jnp.allclose(loss2, ref2, rtol=1e-5, atol=1e-5), (loss2, ref2)

    # Case 3: reduction='sum' path on the same data.
    loss3 = jax.block_until_ready(
        focal_loss(logits2, targets2, reduction="sum", tile_n=8))
    ref3 = _reference(logits2, targets2, reduction="sum")
    assert jnp.allclose(loss3, ref3, rtol=1e-5, atol=1e-5), (loss3, ref3)

    print("KERNEL_OK")
</pallas_src>

<mosaic_0001>
module attributes {stable_mosaic.version = 11 : i64} {
  func.func @kernel(%arg0: i32, %arg1: memref<8x16xf32, #tpu.memory_space<vmem>>, %arg2: memref<8x1xi32, #tpu.memory_space<vmem>>, %arg3: memref<1x1xf32, #tpu.memory_space<vmem>>) attributes {dimension_semantics = [#tpu.dimension_semantics<arbitrary>], iteration_bounds = array<i64: 1>, scalar_prefetch = 0 : i64, scratch_operands = 0 : i64, tpu.core_type = #tpu.core_type<tc>, window_params = [{transform_indices = @transform_0, window_bounds = array<i64: 8, 16>}, {transform_indices = @transform_1, window_bounds = array<i64: 8, 1>}, {pipeline_mode = #tpu.pipeline_mode<synchronous>, transform_indices = @transform_2, window_bounds = array<i64: 1, 1>}]} {
    %c0_i32 = arith.constant 0 : i32
    %0 = arith.cmpi eq, %arg0, %c0_i32 : i32
    %1 = arith.extui %0 : i1 to i32
    %c0_i32_0 = arith.constant 0 : i32
    %2 = arith.cmpi ne, %1, %c0_i32_0 : i32
    scf.if %2 {
      %cst_20 = arith.constant 0.000000e+00 : f32
      %52 = vector.broadcast %cst_20 : f32 to vector<1x1xf32>
      %c0_21 = arith.constant 0 : index
      %c0_22 = arith.constant 0 : index
      %53 = vector.load %arg3[%c0_21, %c0_22] : memref<1x1xf32, #tpu.memory_space<vmem>>, vector<1x1xf32>
      tpu.vector_store %arg3[%c0_21, %c0_22], %52 {strides = array<i32>} : memref<1x1xf32, #tpu.memory_space<vmem>>, vector<1x1xf32>,
    } else {
    }
    %c0 = arith.constant 0 : index
    %c0_1 = arith.constant 0 : index
    %3 = vector.load %arg1[%c0, %c0_1] : memref<8x16xf32, #tpu.memory_space<vmem>>, vector<8x16xf32>
    %c0_2 = arith.constant 0 : index
    %c0_3 = arith.constant 0 : index
    %4 = vector.load %arg2[%c0_2, %c0_3] : memref<8x1xi32, #tpu.memory_space<vmem>>, vector<8x1xi32>
    %cst = arith.constant dense<0xFF800000> : vector<8xf32>
    %5 = vector.multi_reduction <maximumf>, %3, %cst [1] : vector<8x16xf32> to vector<8xf32>
    %6 = vector.shape_cast %5 : vector<8xf32> to vector<8x1xf32>
    %7 = vector.broadcast %6 : vector<8x1xf32> to vector<8x16xf32>
    %8 = arith.subf %3, %7 : vector<8x16xf32>
    %9 = math.exp %8 : vector<8x16xf32>
    %cst_4 = arith.constant dense<0.000000e+00> : vector<8xf32>
    %10 = vector.multi_reduction <add>, %9, %cst_4 [1] : vector<8x16xf32> to vector<8xf32>
    %11 = vector.shape_cast %10 : vector<8xf32> to vector<8x1xf32>
    %12 = math.log %11 : vector<8x1xf32>
    %13 = arith.addf %12, %6 : vector<8x1xf32>
    %14 = tpu.iota {dimensions = array<i32: 1>} : vector<8x16xi32>
    %15 = vector.broadcast %4 : vector<8x1xi32> to vector<8x16xi32>
    %16 = arith.cmpi eq, %14, %15 : vector<8x16xi32>
    %cst_5 = arith.constant 0.000000e+00 : f32
    %17 = vector.broadcast %cst_5 : f32 to vector<8x16xf32>
    %18 = arith.select %16, %3, %17 : vector<8x16xi1>, vector<8x16xf32>
    %cst_6 = arith.constant dense<0.000000e+00> : vector<8xf32>
    %19 = vector.multi_reduction <add>, %18, %cst_6 [1] : vector<8x16xf32> to vector<8xf32>
    %20 = vector.shape_cast %19 : vector<8xf32> to vector<8x1xf32>
    %c8_i32 = arith.constant 8 : i32
    %21 = arith.muli %arg0, %c8_i32 : i32
    %22 = tpu.iota {dimensions = array<i32: 0>} : vector<8x1xi32>
    %23 = vector.broadcast %21 : i32 to vector<8x1xi32>
    %24 = arith.addi %23, %22 : vector<8x1xi32>
    %c8_i32_7 = arith.constant 8 : i32
    %25 = vector.broadcast %c8_i32_7 : i32 to vector<8x1xi32>
    %26 = arith.cmpi slt, %24, %25 : vector<8x1xi32>
    %27 = arith.subf %13, %20 : vector<8x1xf32>
    %cst_8 = arith.constant 0.000000e+00 : f32
    %28 = vector.broadcast %cst_8 : f32 to vector<8x1xf32>
    %29 = arith.maximumf %27, %28 : vector<8x1xf32>
    %cst_9 = arith.constant 0.000000e+00 : f32
    %30 = vector.broadcast %cst_9 : f32 to vector<8x1xf32>
    %31 = arith.select %26, %29, %30 : vector<8x1xi1>, vector<8x1xf32>
    %cst_10 = arith.constant 0.000000e+00 : f32
    %32 = vector.broadcast %cst_10 : f32 to vector<8x1xf32>
    %33 = arith.subf %32, %31 : vector<8x1xf32>
    %34 = math.exp %33 : vector<8x1xf32>
    %cst_11 = arith.constant 1.000000e+00 : f32
    %35 = vector.broadcast %cst_11 : f32 to vector<8x1xf32>
    %36 = arith.subf %35, %34 : vector<8x1xf32>
    %37 = arith.mulf %36, %36 : vector<8x1xf32>
    %cst_12 = arith.constant 1.000000e+00 : f32
    %38 = vector.broadcast %cst_12 : f32 to vector<8x1xf32>
    %39 = arith.mulf %38, %37 : vector<8x1xf32>
    %40 = arith.mulf %39, %31 : vector<8x1xf32>
    %c0_13 = arith.constant 0 : index
    %c0_14 = arith.constant 0 : index
    %41 = vector.load %arg3[%c0_13, %c0_14] : memref<1x1xf32, #tpu.memory_space<vmem>>, vector<1x1xf32>
    %42 = vector.shape_cast %40 : vector<8x1xf32> to vector<1x8x1xf32>
    %cst_15 = arith.constant dense<0.000000e+00> : vector<1xf32>
    %43 = vector.multi_reduction <add>, %42, %cst_15 [1, 2] : vector<1x8x1xf32> to vector<1xf32>
    %44 = vector.shape_cast %43 : vector<1xf32> to vector<1x1x1xf32>
    %45 = vector.extract %44[0, 0, 0] : f32 from vector<1x1x1xf32>
    %46 = vector.broadcast %45 : f32 to vector<1x1xf32>
    %47 = arith.addf %41, %46 : vector<1x1xf32>
    %c0_16 = arith.constant 0 : index
    %c0_17 = arith.constant 0 : index
    %48 = vector.load %arg3[%c0_16, %c0_17] : memref<1x1xf32, #tpu.memory_space<vmem>>, vector<1x1xf32>
    tpu.vector_store %arg3[%c0_16, %c0_17], %47 {strides = array<i32>} : memref<1x1xf32, #tpu.memory_space<vmem>>, vector<1x1xf32>,
    %c0_i32_18 = arith.constant 0 : i32
    %49 = arith.cmpi eq, %arg0, %c0_i32_18 : i32
    %50 = arith.extui %49 : i1 to i32
    %c0_i32_19 = arith.constant 0 : i32
    %51 = arith.cmpi ne, %50, %c0_i32_19 : i32
    scf.if %51 {
      %c0_20 = arith.constant 0 : index
      %c0_21 = arith.constant 0 : index
      %52 = vector.load %arg3[%c0_20, %c0_21] : memref<1x1xf32, #tpu.memory_space<vmem>>, vector<1x1xf32>
      %cst_22 = arith.constant 1.250000e-01 : f32
      %53 = vector.broadcast %cst_22 : f32 to vector<1x1xf32>
      %54 = arith.mulf %52, %53 : vector<1x1xf32>
      %c0_23 = arith.constant 0 : index
      %c0_24 = arith.constant 0 : index
      %55 = vector.load %arg3[%c0_23, %c0_24] : memref<1x1xf32, #tpu.memory_space<vmem>>, vector<1x1xf32>
      tpu.vector_store %arg3[%c0_23, %c0_24], %54 {strides = array<i32>} : memref<1x1xf32, #tpu.memory_space<vmem>>, vector<1x1xf32>,
    } else {
    }
    return
  }
  func.func @transform_0(%arg0: i32) -> (i32, i32) {
    %c0_i32 = arith.constant 0 : i32
    %c0_i32_0 = arith.constant 0 : i32
    return %arg0, %c0_i32 : i32, i32
  }
  func.func @transform_1(%arg0: i32) -> (i32, i32) {
    %c0_i32 = arith.constant 0 : i32
    %c0_i32_0 = arith.constant 0 : i32
    return %arg0, %c0_i32 : i32, i32
  }
  func.func @transform_2(%arg0: i32) -> (i32, i32) {
    %c0_i32 = arith.constant 0 : i32
    %c0_i32_0 = arith.constant 0 : i32
    %c0_i32_1 = arith.constant 0 : i32
    return %c0_i32, %c0_i32_0 : i32, i32
  }
}

</mosaic_0001>

<llo_original>
// kernel: tpu_custom_call.1
$region0: #{tpu_custom_call.1}
  #allocation0 [shape = 'u32[]', space=smem, size = 0x4, offset = 0x4, fixed_abs, tag = 'smem constant byte address 0x4 - core index']
  #allocation1 [shape = 'u32[144,128]{1,0:T(1,128)}', space=vmem, size = 0x12000, scoped, tag = 'internal scratch']
  %s0 = inlined_call_operand.hbm [shape: f32[8,16], index: 0, kind: input, shape index: {}]
  %s1 = inlined_call_operand.hbm [shape: s32[8,1], index: 1, kind: input, shape index: {}]
  %s2 = inlined_call_operand.hbm [shape: f32[1,1], index: 2, kind: output, shape index: {}]
  %s3 = sld [smem:[#allocation0]]
  $region34: #{tpu_custom_call.1} parent=0
    _
  %s5 = ssub.s32 1, %s3
  %s6 = scalar_select 0, %s5, %s3
  $region1: #{tpu_custom_call.1} parent=0
    #allocation2 [shape = 'u8[4096]{0}', space=vmem, size = 0x1000, scoped, tag = 'input window, operand 0, single buffered']
    #allocation3 [shape = 's32[1]{0}', space=sflag, size = 0x4, scoped, tag = 'scoped memory for tpu_custom_call.1']
    #allocation4 [shape = 's32[1]{0}', space=sflag, size = 0x4, scoped, tag = 'scoped memory for tpu_custom_call.1']
    #allocation5 [shape = 'u8[4096]{0}', space=vmem, size = 0x1000, scoped, tag = 'input window, operand 1, single buffered']
    #allocation6 [shape = 's32[1]{0}', space=sflag, size = 0x4, scoped, tag = 'scoped memory for tpu_custom_call.1']
    #allocation7 [shape = 'u8[512]{0}', space=vmem, size = 0x400, scoped, tag = 'output window, operand 0, single buffered']
    %7 = vsyncpa [#allocation3], 0
    %8 = vsyncpa [#allocation6], 0
    %9 = vsyncpa [#allocation4], 0
    // Predicated region
    $region2: #{tpu_custom_call.1} parent=1 // pred_check
      _
    $region3: #{tpu_custom_call.1} parent=1 // pred_check_branch
      %11 = sbr.rel (0) target = $region5
    $region4: #{tpu_custom_call.1} parent=1 // pred_region
      %s13 = ssub.s32 128, 128
      %14 = vsyncadd [#allocation3], %s13
      %s16 = sshll.u32 [#allocation2], 4
      %s17 = int_to_ptr.vmem [resolvable:$true] %s16
      %19 = dma.hbm_to_vmem [thread:$0]  %s0, 128, %s17, [#allocation3]
    $region5: #{tpu_custom_call.1} parent=1 // pred_fallthru
      _
    // Predicated region
    $region6: #{tpu_custom_call.1} parent=1 // pred_check
      _
    $region7: #{tpu_custom_call.1} parent=1 // pred_check_branch
      %21 = sbr.rel (0) target = $region9
    $region8: #{tpu_custom_call.1} parent=1 // pred_region
      %s23 = ssub.s32 128, 128
      %24 = vsyncadd [#allocation6], %s23
      %s26 = sshll.u32 [#allocation5], 4
      %s27 = int_to_ptr.vmem [resolvable:$true] %s26
      %29 = dma.hbm_to_vmem [thread:$0]  %s1, 128, %s27, [#allocation6]
    $region9: #{tpu_custom_call.1} parent=1 // pred_fallthru
      _
    // Predicated region
    $region10: #{tpu_custom_call.1} parent=1 // pred_check
      _
    $region11: #{tpu_custom_call.1} parent=1 // pred_check_branch
      %31 = sbr.rel (0) target = $region13
    $region12: #{tpu_custom_call.1} parent=1 // pred_region
      %32 = dma.done [#allocation3], 128
    $region13: #{tpu_custom_call.1} parent=1 // pred_fallthru
      _
    // Predicated region
    $region14: #{tpu_custom_call.1} parent=1 // pred_check
      _
    $region15: #{tpu_custom_call.1} parent=1 // pred_check_branch
      %34 = sbr.rel (0) target = $region17
    $region16: #{tpu_custom_call.1} parent=1 // pred_region
      %35 = dma.done [#allocation6], 128
    $region17: #{tpu_custom_call.1} parent=1 // pred_fallthru
      _
    %p36 = scmp.eq.s32.totalorder 0, 0
    // Predicated region
    $region18: #{tpu_custom_call.1} parent=1 // pred_check
      %p37 = pneg %p36
    $region19: #{tpu_custom_call.1} parent=1 // pred_check_branch
      %39 = sbr.rel (%p37) target = $region21
    $region20: #{tpu_custom_call.1} parent=1 // pred_region
      %vm40 = vcmask 0
      %41 = vst.msk [vmem:[#allocation7] sm:$0x1] %vm40, 0.0
    $region21: #{tpu_custom_call.1} parent=1 // pred_fallthru
      _
    %v42 = vld [vmem:[#allocation2] sm:$0xff]
    %v43 = vld [vmem:[#allocation5] sm:$0xff]
    %vm44 = vcmask 130048
    %v45 = vsel %vm44, %v42, -inf
    %46 = vmax.xlane.f32.xlu0 %v45
    %v47 = vpop.xlane.xlu0 %46
    %v48 = vsub.f32 %v42, %v47
    %v49 = vmul.f32 %v48, 1.442695
    %v50 = vpow.pop %v49
    %v51 = vsel %vm44, %v50, 0.0
    %52 = vadd.xlane.f32.xlu0 %v51
    %v53 = vpop.xlane.xlu0 %52
    %v54 = vlog2.pop %v53
    %v55 = vmul.f32 %v54, 0.6931472
    %v56 = vadd.f32 %v55, %v47
    %v57 = vlaneseq
    %v58 = vand.u32 %v57, 127
    %59 = vset.pattern.permute.xlu0 0
    %60 = vperm.xlu0 %59, %v43
    %v61 = vpop.permute.xlu0 %60
    %vm62 = vcmp.eq.s32.totalorder %v58, %v61
    %v63 = vsel %vm62, %v42, 0.0
    %v64 = vsel %vm44, %v63, 0.0
    %65 = vadd.xlane.f32.xlu0 %v64
    %v66 = vpop.xlane.xlu0 %65
    %s67 = smul.u32 0, 8
    %v68 = vlaneseq
    %v69 = vshrl.u32 %v68, 7
    %v70 = vstv %s67
    %v71 = vadd.s32 %v70, %v69
    %vm72 = vcmp.lt.s32.totalorder %v71, 8
    %v73 = vsub.f32 %v56, %v66
    %v74 = vmax.f32 %v73, 0.0
    %v75 = vsel %vm72, %v74, 0.0
    %v76 = vsub.f32 0.0, %v75
    %v77 = vmul.f32 %v76, 1.442695
    %v78 = vpow.pop %v77
    %v79 = vsub.f32 1.0, %v78
    %v80 = vmul.f32 %v79, %v79
    %v81 = vmul.f32 %v80, %v75
    %v82 = vld [vmem:[#allocation7] sm:$0x1]
    %vm83 = vcmask 7168
    %v84 = vsel %vm83, %v81, 0.0
    %85 = vadd.xlane.f32.xlu0 %v84
    %v86 = vpop.xlane.xlu0 %85
    %v87 = vrot.slane %v86, 4
    %v88 = vadd.f32 %v86, %v87
    %v89 = vrot.slane %v88, 2
    %v90 = vadd.f32 %v88, %v89
    %v91 = vrot.slane %v90, 1
    %v92 = vadd.f32 %v90, %v91
    %s93 = vtos %v92
    %v94 = vstv %s93
    %v95 = vadd.f32 %v82, %v94
    %vm96 = vcmask 0
    %97 = vst.msk [vmem:[#allocation7] sm:$0x1] %vm96, %v95
    // Predicated region
    $region22: #{tpu_custom_call.1} parent=1 // pred_check
      %p98 = pneg %p36
    $region23: #{tpu_custom_call.1} parent=1 // pred_check_branch
      %100 = sbr.rel (%p98) target = $region25
    $region24: #{tpu_custom_call.1} parent=1 // pred_region
      %v101 = vld [vmem:[#allocation7] sm:$0x1]
      %v102 = vmul.f32 %v101, 0.125
      %103 = vst.msk [vmem:[#allocation7] sm:$0x1] %vm96, %v102
    $region25: #{tpu_custom_call.1} parent=1 // pred_fallthru
      _
    // Predicated region
    $region26: #{tpu_custom_call.1} parent=1 // pred_check
      _
    $region27: #{tpu_custom_call.1} parent=1 // pred_check_branch
      %105 = sbr.rel (0) target = $region29
    $region28: #{tpu_custom_call.1} parent=1 // pred_region
      %s107 = ssub.s32 16, 16
      %108 = vsyncadd [#allocation4], %s107
      %s110 = sshll.u32 [#allocation7], 4
      %s111 = int_to_ptr.vmem [resolvable:$true] %s110
      %113 = dma.vmem_to_hbm [thread:$0]  %s111, 16, %s2, [#allocation4]
    $region29: #{tpu_custom_call.1} parent=1 // pred_fallthru
      _
    // Predicated region
    $region30: #{tpu_custom_call.1} parent=1 // pred_check
      _
    $region31: #{tpu_custom_call.1} parent=1 // pred_check_branch
      %115 = sbr.rel (0) target = $region33
    $region32: #{tpu_custom_call.1} parent=1 // pred_region
      %116 = dma.done [#allocation4], 16
    $region33: #{tpu_custom_call.1} parent=1 // pred_fallthru
      _
    %117 = vsyncpa [#allocation3], 1
    %118 = vsyncpa [#allocation6], 1
    %119 = vsyncpa [#allocation4], 1

</llo_original>
